<compile_context>
chip_gen: v7x
topology: tpu7x:2x2x1
jax: 0.10.0
libtpu: 0.0.40
codegen_flags: <defaults>
</compile_context>

<pallas_src>
import functools

import jax
import jax.numpy as jnp
from jax.experimental import pallas as pl
from jax.experimental.pallas import tpu as pltpu


LN_EPS = 1e-5  # torch.nn.LayerNorm default eps


def _router_kernel(x_ref, a_ref, onecol_ref, colsum_ref, bias_ref, probs_ref):
    """One row tile of fused LayerNorm + Linear(no bias) + softmax.

    LayerNorm is folded into the matmul so the D-wide mean/var reductions run
    on the MXU instead of the XLU:

      A        = [ (gamma * W)^T | 1/D ]     (D, L+1)  grid-resident
      onecol   = 1/D                         (D, 1)    grid-resident
      colsum_l = sum_d gamma_d * W[l, d]     (1, L)    grid-resident
      bias_l   = sum_d beta_d  * W[l, d]     (1, L)    grid-resident

      z      = x @ A                          -> raw precursor + row mean (MXU)
      var    = ((x - mean)^2) @ onecol                                   (MXU)
      logits = rsqrt(var + eps) * (raw - mean * colsum) + bias           (VPU)
      probs  = softmax(logits)                              (VPU + EUP + XLU)
    """
    L = a_ref.shape[1] - 1
    x = x_ref[...].astype(jnp.float32)

    z = jnp.dot(x, a_ref[...], preferred_element_type=jnp.float32)  # (tile, L+1)
    raw = z[:, :L]                                                   # (tile, L)
    mean = z[:, L:]                                                  # (tile, 1)

    # Two-pass (centered) variance: no E[x^2]-mean^2 cancellation risk.
    centered = x - mean
    var = jnp.dot(centered * centered, onecol_ref[...],
                  preferred_element_type=jnp.float32)                # (tile, 1)
    inv = jax.lax.rsqrt(var + LN_EPS)

    logits = inv * (raw - mean * colsum_ref[...]) + bias_ref[...]

    # Numerically-stable softmax over the (small) layer axis.  Exact division
    # (not the approx EUP reciprocal) so rows sum to 1 like torch.softmax.
    m = jnp.max(logits, axis=-1, keepdims=True)
    e = jnp.exp(logits - m)
    probs = e / jnp.sum(e, axis=-1, keepdims=True)

    probs_ref[...] = probs.astype(probs_ref.dtype)


def _sublane_multiple(itemsize):
    # f32 -> 8, bf16 -> 16, int8/fp8 -> 32 rows per packed sublane group.
    return 8 * max(1, 4 // itemsize)


def _pick_tile_rows(n_rows, in_itemsize, out_itemsize,
                    budget_bytes=6 << 20, min_steps=8):
    """Row-tile size with lane-padding-aware VMEM accounting.

    A (tile, D<=128) input block and a (tile, L<=128) output block each occupy
    tile * 128 * itemsize bytes in VMEM (lane padding), double-buffered by the
    BlockSpec pipeline.  The ~6 MiB budget fits v5e's 16 MiB default scoped
    VMEM and leaves wide headroom on v7x's 64 MiB physical VMEM.  The tile is
    also capped so the grid has >= min_steps steps: enough for DMA/compute
    overlap and for the "parallel" axis to feed both v7x TensorCores.
    """
    per_row = 2 * 128 * (in_itemsize + out_itemsize)     # double-buffered in+out
    sub = max(_sublane_multiple(in_itemsize), _sublane_multiple(out_itemsize))
    t = budget_bytes // per_row
    t = min(t, -(-n_rows // min_steps))                  # >= min_steps grid steps
    t = max(sub, (t // sub) * sub)                       # dtype sublane multiple
    n_up = -(-n_rows // sub) * sub                       # don't overshoot tiny N
    return min(t, n_up)


@functools.partial(jax.jit, static_argnames=("topk", "out_dtype"))
def router_forward(x, gamma, beta, w, topk=None, out_dtype=None):
    """JAX/Pallas equivalent of Router.forward.

    x:     [..., D] with D = input_dim + iters (kept in its native dtype)
    gamma: [D]  layer_norm.weight
    beta:  [D]  layer_norm.bias
    w:     [num_layers, D]  fc.weight
    Probs come back in `out_dtype` (default: x.dtype).
    """
    D = x.shape[-1]
    L = w.shape[0]
    lead_shape = x.shape[:-1]
    n_rows = 1
    for s in lead_shape:
        n_rows *= s

    out_dtype = jnp.dtype(out_dtype) if out_dtype is not None else x.dtype

    # Keep x in its native dtype in HBM (bf16 stays bf16); the kernel upcasts.
    x2d = x.reshape(n_rows, D)

    # Fold gamma/beta into the fc weight (tiny precompute, grid-resident).
    gamma32 = gamma.astype(jnp.float32)
    beta32 = beta.astype(jnp.float32)
    w32 = w.astype(jnp.float32)
    wg_t = (w32 * gamma32[None, :]).T                              # (D, L)
    onecol = jnp.full((D, 1), 1.0 / D, jnp.float32)                # (D, 1)
    a = jnp.concatenate([wg_t, onecol], axis=1)                    # (D, L+1)
    colsum = jnp.sum(wg_t, axis=0, keepdims=True)                  # (1, L)
    bias = (beta32 @ w32.T).reshape(1, L)                          # (1, L)

    tile_n = _pick_tile_rows(n_rows, x2d.dtype.itemsize, out_dtype.itemsize)
    grid = (pl.cdiv(n_rows, tile_n),)

    in_specs = [
        pl.BlockSpec((tile_n, D), lambda i: (i, 0)),   # streamed / pipelined
        pl.BlockSpec((D, L + 1), lambda i: (0, 0)),    # resident
        pl.BlockSpec((D, 1), lambda i: (0, 0)),        # resident
        pl.BlockSpec((1, L), lambda i: (0, 0)),        # resident
        pl.BlockSpec((1, L), lambda i: (0, 0)),        # resident
    ]
    out_spec = pl.BlockSpec((tile_n, L), lambda i: (i, 0))
    out_sds = jax.ShapeDtypeStruct((n_rows, L), out_dtype)

    cost = pl.CostEstimate(
        flops=2 * n_rows * D * (L + 2) + 12 * n_rows * D,
        transcendentals=n_rows * (L + 1),
        bytes_accessed=(n_rows * D * x2d.dtype.itemsize
                        + n_rows * L * out_dtype.itemsize
                        + (D * (L + 2) + 2 * L) * 4),
    )
    compiler_params = pltpu.CompilerParams(
        dimension_semantics=("parallel",),
        vmem_limit_bytes=32 << 20,   # explicit; within every generation's VMEM
    )

    probs2d = pl.pallas_call(
        _router_kernel,
        out_shape=out_sds,
        grid=grid,
        in_specs=in_specs,
        out_specs=out_spec,
        compiler_params=compiler_params,
        cost_estimate=cost,
    )(x2d, a, onecol, colsum, bias)

    probs = probs2d.reshape(*lead_shape, L)
    if topk is not None:
        # Softmax is monotone, so top_k(probs) == top_k(logits); this removes
        # the logits HBM stream + its VMEM double-buffer on the inference path.
        # (Tie-breaking could differ only if two near-equal logits collapse to
        # identical probs in the output dtype.)
        _, topk_indices = jax.lax.top_k(probs, topk)
        return probs, topk_indices
    return probs


def router_block_inputs(hidden_states, attention_mask, iteration, iters):
    """RouterBlock input prep: mask hidden states, concat iteration one-hot."""
    if attention_mask is not None:
        mask = attention_mask[..., None].astype(hidden_states.dtype)
        hidden_states = hidden_states * mask
    b, s, _ = hidden_states.shape
    one_hot = jax.nn.one_hot(iteration, iters, dtype=hidden_states.dtype)
    one_hot = jnp.broadcast_to(one_hot, (b, s, iters))
    router_inputs = jnp.concatenate([hidden_states, one_hot], axis=-1)
    # TODO(synk): the per-expert GPT-2 layer calls and the probs-weighted sum of
    # their outputs are external modules and are not re-implemented here.
    return hidden_states, router_inputs


def init_router_params(key, input_dim, num_layers, iters):
    """Deterministic parameter init mirroring Router.__init__."""
    D = input_dim + iters
    gamma = jnp.ones((D,), jnp.float32)   # LayerNorm defaults
    beta = jnp.zeros((D,), jnp.float32)
    bound = 1.0 / jnp.sqrt(jnp.float32(D))
    w = jax.random.uniform(key, (num_layers, D), jnp.float32, -bound, bound) * 0.01
    min_size = min(iters, num_layers)
    eye = jnp.eye(min_size, dtype=jnp.float32)
    w = w.at[:min_size, input_dim:input_dim + min_size].set(eye)
    return gamma, beta, w


def _reference_forward(x, gamma, beta, w, topk=None):
    """Pure-JAX reference for correctness checking."""
    mean = jnp.mean(x, axis=-1, keepdims=True)
    var = jnp.mean((x - mean) ** 2, axis=-1, keepdims=True)
    y = (x - mean) / jnp.sqrt(var + LN_EPS) * gamma + beta
    logits = y @ w.T
    probs = jax.nn.softmax(logits, axis=-1)
    if topk is not None:
        _, idx = jax.lax.top_k(logits, topk)
        return probs, idx
    return probs


if __name__ == "__main__":
    # Small shapes consistent with the module: input_dim=24, iters=8 -> D=32.
    input_dim, iters, num_layers = 24, 8, 8
    batch, seq = 2, 8

    key = jax.random.PRNGKey(0)
    k_param, k_x = jax.random.split(key)
    gamma, beta, w = init_router_params(k_param, input_dim, num_layers, iters)

    hidden = jax.random.normal(k_x, (batch, seq, input_dim), jnp.float32)
    attention_mask = jnp.ones((batch, seq), jnp.float32)
    iteration = 3
    _, router_inputs = router_block_inputs(hidden, attention_mask, iteration, iters)

    # Training path (topk=None): probs only.
    probs = router_forward(router_inputs, gamma, beta, w)
    probs = jax.block_until_ready(probs)
    ref_probs = _reference_forward(router_inputs, gamma, beta, w)
    assert probs.shape == (batch, seq, num_layers)
    # Tolerance covers the MXU pass decomposition of the stats/logits matmuls.
    assert jnp.allclose(probs, ref_probs, atol=5e-3, rtol=5e-3)

    # Inference path (topk=1, as RouterBlock uses): no logits stream; top-k is
    # taken on probs (softmax is monotone).
    probs_k, idx_k = router_forward(router_inputs, gamma, beta, w, topk=1)
    jax.block_until_ready((probs_k, idx_k))
    ref_probs_k, ref_idx_k = _reference_forward(router_inputs, gamma, beta, w, topk=1)
    assert idx_k.shape == (batch, seq, 1)
    assert jnp.allclose(probs_k, ref_probs_k, atol=5e-3, rtol=5e-3)
    assert jnp.array_equal(idx_k, ref_idx_k)

    # Non-default gamma/beta (the torch init has beta == 0) to exercise the
    # folded-weight / output-bias path end-to-end.
    k_g, k_b = jax.random.split(jax.random.PRNGKey(1))
    gamma2 = 1.0 + 0.1 * jax.random.normal(k_g, gamma.shape, jnp.float32)
    beta2 = 0.1 * jax.random.normal(k_b, beta.shape, jnp.float32)
    probs2 = jax.block_until_ready(router_forward(router_inputs, gamma2, beta2, w))
    ref2 = _reference_forward(router_inputs, gamma2, beta2, w)
    assert jnp.allclose(probs2, ref2, atol=5e-3, rtol=5e-3)

    # bf16 activations stay bf16 in HBM and probs come back bf16 (half the
    # streamed bytes in both directions); tolerance covers bf16 output rounding.
    x_bf16 = router_inputs.astype(jnp.bfloat16)
    probs_bf16 = router_forward(x_bf16, gamma, beta, w)
    jax.block_until_ready(probs_bf16)
    ref_bf16 = _reference_forward(x_bf16.astype(jnp.float32), gamma, beta, w)
    assert probs_bf16.dtype == jnp.bfloat16
    assert jnp.allclose(probs_bf16.astype(jnp.float32), ref_bf16, atol=2e-2, rtol=2e-2)

    print("KERNEL_OK")
</pallas_src>

<mosaic_0001>
module attributes {stable_mosaic.version = 11 : i64} {
  func.func @_router_kernel(%arg0: i32, %arg1: memref<8x32xf32, #tpu.memory_space<vmem>>, %arg2: memref<32x9xf32, #tpu.memory_space<vmem>>, %arg3: memref<32x1xf32, #tpu.memory_space<vmem>>, %arg4: memref<1x8xf32, #tpu.memory_space<vmem>>, %arg5: memref<1x8xf32, #tpu.memory_space<vmem>>, %arg6: memref<8x8xf32, #tpu.memory_space<vmem>>) attributes {dimension_semantics = [#tpu.dimension_semantics<parallel>], iteration_bounds = array<i64: 2>, scalar_prefetch = 0 : i64, scratch_operands = 0 : i64, tpu.core_type = #tpu.core_type<tc>, window_params = [{transform_indices = @transform_0, window_bounds = array<i64: 8, 32>}, {pipeline_mode = #tpu.pipeline_mode<synchronous>, transform_indices = @transform_1, window_bounds = array<i64: 32, 9>}, {pipeline_mode = #tpu.pipeline_mode<synchronous>, transform_indices = @transform_2, window_bounds = array<i64: 32, 1>}, {pipeline_mode = #tpu.pipeline_mode<synchronous>, transform_indices = @transform_3, window_bounds = array<i64: 1, 8>}, {pipeline_mode = #tpu.pipeline_mode<synchronous>, transform_indices = @transform_4, window_bounds = array<i64: 1, 8>}, {transform_indices = @transform_5, window_bounds = array<i64: 8, 8>}]} {
    %c0 = arith.constant 0 : index
    %c0_0 = arith.constant 0 : index
    %0 = vector.load %arg1[%c0, %c0_0] : memref<8x32xf32, #tpu.memory_space<vmem>>, vector<8x32xf32>
    %c0_1 = arith.constant 0 : index
    %c0_2 = arith.constant 0 : index
    %1 = vector.load %arg2[%c0_1, %c0_2] : memref<32x9xf32, #tpu.memory_space<vmem>>, vector<32x9xf32>
    %cst = arith.constant dense<0.000000e+00> : vector<8x9xf32>
    %2 = tpu.matmul %0, %1, %cst {dimension_numbers = #tpu.dot_dimension_numbers<[1], [0], [0], [1], [0, 0, 1, 1], [], []>} : vector<8x32xf32>, vector<32x9xf32>, vector<8x9xf32> -> vector<8x9xf32>
    %3 = vector.extract_strided_slice %2 {offsets = [0, 0], sizes = [8, 8], strides = [1, 1]} : vector<8x9xf32> to vector<8x8xf32>
    %4 = vector.extract_strided_slice %2 {offsets = [0, 8], sizes = [8, 1], strides = [1, 1]} : vector<8x9xf32> to vector<8x1xf32>
    %5 = vector.broadcast %4 : vector<8x1xf32> to vector<8x32xf32>
    %6 = arith.subf %0, %5 : vector<8x32xf32>
    %7 = arith.mulf %6, %6 : vector<8x32xf32>
    %c0_3 = arith.constant 0 : index
    %c0_4 = arith.constant 0 : index
    %8 = vector.load %arg3[%c0_3, %c0_4] : memref<32x1xf32, #tpu.memory_space<vmem>>, vector<32x1xf32>
    %cst_5 = arith.constant dense<0.000000e+00> : vector<8x1xf32>
    %9 = tpu.matmul %7, %8, %cst_5 {dimension_numbers = #tpu.dot_dimension_numbers<[1], [0], [0], [1], [0, 0, 1, 1], [], []>} : vector<8x32xf32>, vector<32x1xf32>, vector<8x1xf32> -> vector<8x1xf32>
    %cst_6 = arith.constant 9.99999974E-6 : f32
    %10 = vector.broadcast %cst_6 : f32 to vector<8x1xf32>
    %11 = arith.addf %9, %10 : vector<8x1xf32>
    %12 = math.rsqrt %11 : vector<8x1xf32>
    %c0_7 = arith.constant 0 : index
    %c0_8 = arith.constant 0 : index
    %13 = vector.load %arg4[%c0_7, %c0_8] : memref<1x8xf32, #tpu.memory_space<vmem>>, vector<1x8xf32>
    %14 = vector.broadcast %4 : vector<8x1xf32> to vector<8x8xf32>
    %15 = vector.broadcast %13 : vector<1x8xf32> to vector<8x8xf32>
    %16 = arith.mulf %14, %15 : vector<8x8xf32>
    %17 = arith.subf %3, %16 : vector<8x8xf32>
    %18 = vector.broadcast %12 : vector<8x1xf32> to vector<8x8xf32>
    %19 = arith.mulf %18, %17 : vector<8x8xf32>
    %c0_9 = arith.constant 0 : index
    %c0_10 = arith.constant 0 : index
    %20 = vector.load %arg5[%c0_9, %c0_10] : memref<1x8xf32, #tpu.memory_space<vmem>>, vector<1x8xf32>
    %21 = vector.broadcast %20 : vector<1x8xf32> to vector<8x8xf32>
    %22 = arith.addf %19, %21 : vector<8x8xf32>
    %cst_11 = arith.constant dense<0xFF800000> : vector<8xf32>
    %23 = vector.multi_reduction <maximumf>, %22, %cst_11 [1] : vector<8x8xf32> to vector<8xf32>
    %24 = vector.shape_cast %23 : vector<8xf32> to vector<8x1xf32>
    %25 = vector.broadcast %24 : vector<8x1xf32> to vector<8x8xf32>
    %26 = arith.subf %22, %25 : vector<8x8xf32>
    %27 = math.exp %26 : vector<8x8xf32>
    %cst_12 = arith.constant dense<0.000000e+00> : vector<8xf32>
    %28 = vector.multi_reduction <add>, %27, %cst_12 [1] : vector<8x8xf32> to vector<8xf32>
    %29 = vector.shape_cast %28 : vector<8xf32> to vector<8x1xf32>
    %30 = vector.broadcast %29 : vector<8x1xf32> to vector<8x8xf32>
    %31 = arith.divf %27, %30 : vector<8x8xf32>
    %c0_13 = arith.constant 0 : index
    %c0_14 = arith.constant 0 : index
    %32 = vector.load %arg6[%c0_13, %c0_14] : memref<8x8xf32, #tpu.memory_space<vmem>>, vector<8x8xf32>
    tpu.vector_store %arg6[%c0_13, %c0_14], %31 {strides = array<i32>} : memref<8x8xf32, #tpu.memory_space<vmem>>, vector<8x8xf32>,
    return
  }
  func.func @transform_0(%arg0: i32) -> (i32, i32) {
    %c0_i32 = arith.constant 0 : i32
    %c0_i32_0 = arith.constant 0 : i32
    return %arg0, %c0_i32 : i32, i32
  }
  func.func @transform_1(%arg0: i32) -> (i32, i32) {
    %c0_i32 = arith.constant 0 : i32
    %c0_i32_0 = arith.constant 0 : i32
    %c0_i32_1 = arith.constant 0 : i32
    return %c0_i32, %c0_i32_0 : i32, i32
  }
  func.func @transform_2(%arg0: i32) -> (i32, i32) {
    %c0_i32 = arith.constant 0 : i32
    %c0_i32_0 = arith.constant 0 : i32
    %c0_i32_1 = arith.constant 0 : i32
    return %c0_i32, %c0_i32_0 : i32, i32
  }
  func.func @transform_3(%arg0: i32) -> (i32, i32) {
    %c0_i32 = arith.constant 0 : i32
    %c0_i32_0 = arith.constant 0 : i32
    %c0_i32_1 = arith.constant 0 : i32
    return %c0_i32, %c0_i32_0 : i32, i32
  }
  func.func @transform_4(%arg0: i32) -> (i32, i32) {
    %c0_i32 = arith.constant 0 : i32
    %c0_i32_0 = arith.constant 0 : i32
    %c0_i32_1 = arith.constant 0 : i32
    return %c0_i32, %c0_i32_0 : i32, i32
  }
  func.func @transform_5(%arg0: i32) -> (i32, i32) {
    %c0_i32 = arith.constant 0 : i32
    %c0_i32_0 = arith.constant 0 : i32
    return %arg0, %c0_i32 : i32, i32
  }
}

</mosaic_0001>

<llo_original>
// kernel: router_forward.1
$region0: #{router_forward.1}
  #allocation0 [shape = 'u32[]', space=smem, size = 0x4, offset = 0x4, fixed_abs, tag = 'smem constant byte address 0x4 - core index']
  #allocation1 [shape = 'u32[144,128]{1,0:T(1,128)}', space=vmem, size = 0x12000, scoped, tag = 'internal scratch']
  %s0 = inlined_call_operand.vmem [shape: f32[16,32], index: 0, kind: input, shape index: {}]
  %s1 = inlined_call_operand.vmem [shape: f32[32,9], index: 1, kind: input, shape index: {}]
  %s2 = inlined_call_operand.vmem [shape: f32[32,1], index: 2, kind: input, shape index: {}]
  %s3 = inlined_call_operand.vmem [shape: f32[1,8], index: 3, kind: input, shape index: {}]
  %s4 = inlined_call_operand.vmem [shape: f32[1,8], index: 4, kind: input, shape index: {}]
  %s5 = inlined_call_operand.hbm [shape: f32[16,8], index: 5, kind: output, shape index: {}]
  %s6 = sld [smem:[#allocation0]]
  $region53: #{router_forward.1} parent=0
    _
  %s8 = ssub.s32 1, %s6
  %s9 = scalar_select 0, %s8, %s6
  $region1: #{router_forward.1} parent=0
    #allocation2 [shape = 'u8[8192]{0}', space=vmem, size = 0x2000, scoped, tag = 'output window, operand 0']
    #allocation3 [shape = 's32[2]{0}', space=sflag, size = 0x8, scoped, tag = 'scoped memory for router_forward.1']
    %10 = vsyncpa [#allocation3], 0
    %s11 = scalar_lea.sflag [#allocation3], 1
    %12 = vsyncpa %s11, 0
    loop: start=0, step=1, limit=4
    $region2: #{router_forward.1} parent=1 // loop_pre_header
      _
    $region3: #{router_forward.1} parent=1 // loop_header
      %s14 = sphi 0, %s18
      %p15 = scmp.ge.s32.totalorder %s14, 4
      %s24 = sphi 0, %s26
      %s27 = sphi 0, %s24
      %s28 = sphi 0, %s27
      %s44 = sphi 0, %s28
      %s48 = sphi 0, %s48
      %s50 = sphi 0, %s48
      %s51 = sphi 0, %s50
      %s65 = sphi 0, %s51
      %s69 = sphi 0, %s69
      %s71 = sphi 0, %s69
      %s72 = sphi 0, %s71
      %s86 = sphi 0, %s72
      %s90 = sphi 0, %s90
      %s92 = sphi 0, %s90
      %s93 = sphi 0, %s92
      %s107 = sphi 0, %s93
      %s111 = sphi 0, %s111
      %s113 = sphi 0, %s111
      %s114 = sphi 0, %s113
      %s128 = sphi 0, %s114
      %s134 = sphi 0, %s136
      %s137 = sphi 0, %s134
      %s138 = sphi 0, %s137
      %s154 = sphi 0, %s138
    $region4: #{router_forward.1} parent=1 // loop_header_branch
      %17 = sbr.rel (%p15) target = $region8
    $region5: #{router_forward.1} parent=1 // loop_body
      %s19 = ssub.s32 %s14, 1
      %s20 = ssub.s32 %s14, 2
      %s21 = sadd.s32 %s14, 1
      %s22 = ssub.s32 %s14, %s21
      %p23 = scmp.eq.s32.totalorder %s22, 0
      %s25 = sadd.s32 %s24, 1
      %s26 = scalar_select %p23, %s24, %s25
      %p29 = pneg %p23
      %p30 = scmp.eq.s32.totalorder %s14, 1
      %p31 = por %p29, %p30
      %p32 = scmp.ne.s32.totalorder %s24, %s27
      %p33 = scmp.eq.s32.totalorder %s14, 0
      %p34 = por %p32, %p33
      %p35 = scmp.ne.s32.totalorder %s24, %s27
      %p36 = scmp.eq.s32.totalorder %s19, 1
      %p37 = por %p35, %p36
      %p38 = scmp.ne.s32.totalorder %s27, %s28
      %p39 = scmp.eq.s32.totalorder %s19, 0
      %p40 = por %p38, %p39
      %p41 = scmp.ne.s32.totalorder %s27, %s28
      %p42 = scmp.eq.s32.totalorder %s20, 1
      %p43 = por %p41, %p42
      %p45 = scmp.ne.s32.totalorder %s28, %s44
      %p46 = scmp.eq.s32.totalorder %s20, 0
      %p47 = por %p45, %p46
      %s49 = sadd.s32 %s48, 1
      %p52 = scmp.eq.s32.totalorder %s14, 1
      %p53 = scmp.ne.s32.totalorder %s48, %s50
      %p54 = scmp.eq.s32.totalorder %s14, 0
      %p55 = por %p53, %p54
      %p56 = scmp.ne.s32.totalorder %s48, %s50
      %p57 = scmp.eq.s32.totalorder %s19, 1
      %p58 = por %p56, %p57
      %p59 = scmp.ne.s32.totalorder %s50, %s51
      %p60 = scmp.eq.s32.totalorder %s19, 0
      %p61 = por %p59, %p60
      %p62 = scmp.ne.s32.totalorder %s50, %s51
      %p63 = scmp.eq.s32.totalorder %s20, 1
      %p64 = por %p62, %p63
      %p66 = scmp.ne.s32.totalorder %s51, %s65
      %p67 = scmp.eq.s32.totalorder %s20, 0
      %p68 = por %p66, %p67
      %s70 = sadd.s32 %s69, 1
      %p73 = scmp.eq.s32.totalorder %s14, 1
      %p74 = scmp.ne.s32.totalorder %s69, %s71
      %p75 = scmp.eq.s32.totalorder %s14, 0
      %p76 = por %p74, %p75
      %p77 = scmp.ne.s32.totalorder %s69, %s71
      %p78 = scmp.eq.s32.totalorder %s19, 1
      %p79 = por %p77, %p78
      %p80 = scmp.ne.s32.totalorder %s71, %s72
      %p81 = scmp.eq.s32.totalorder %s19, 0
      %p82 = por %p80, %p81
      %p83 = scmp.ne.s32.totalorder %s71, %s72
      %p84 = scmp.eq.s32.totalorder %s20, 1
      %p85 = por %p83, %p84
      %p87 = scmp.ne.s32.totalorder %s72, %s86
      %p88 = scmp.eq.s32.totalorder %s20, 0
      %p89 = por %p87, %p88
      %s91 = sadd.s32 %s90, 1
      %p94 = scmp.eq.s32.totalorder %s14, 1
      %p95 = scmp.ne.s32.totalorder %s90, %s92
      %p96 = scmp.eq.s32.totalorder %s14, 0
      %p97 = por %p95, %p96
      %p98 = scmp.ne.s32.totalorder %s90, %s92
      %p99 = scmp.eq.s32.totalorder %s19, 1
      %p100 = por %p98, %p99
      %p101 = scmp.ne.s32.totalorder %s92, %s93
      %p102 = scmp.eq.s32.totalorder %s19, 0
      %p103 = por %p101, %p102
      %p104 = scmp.ne.s32.totalorder %s92, %s93
      %p105 = scmp.eq.s32.totalorder %s20, 1
      %p106 = por %p104, %p105
      %p108 = scmp.ne.s32.totalorder %s93, %s107
      %p109 = scmp.eq.s32.totalorder %s20, 0
      %p110 = por %p108, %p109
      %s112 = sadd.s32 %s111, 1
      %p115 = scmp.eq.s32.totalorder %s14, 1
      %p116 = scmp.ne.s32.totalorder %s111, %s113
      %p117 = scmp.eq.s32.totalorder %s14, 0
      %p118 = por %p116, %p117
      %p119 = scmp.ne.s32.totalorder %s111, %s113
      %p120 = scmp.eq.s32.totalorder %s19, 1
      %p121 = por %p119, %p120
      %p122 = scmp.ne.s32.totalorder %s113, %s114
      %p123 = scmp.eq.s32.totalorder %s19, 0
      %p124 = por %p122, %p123
      %p125 = scmp.ne.s32.totalorder %s113, %s114
      %p126 = scmp.eq.s32.totalorder %s20, 1
      %p127 = por %p125, %p126
      %p129 = scmp.ne.s32.totalorder %s114, %s128
      %p130 = scmp.eq.s32.totalorder %s20, 0
      %p131 = por %p129, %p130
      %s132 = ssub.s32 %s14, %s21
      %p133 = scmp.eq.s32.totalorder %s132, 0
      %s135 = sadd.s32 %s134, 1
      %s136 = scalar_select %p133, %s134, %s135
      %p139 = pneg %p133
      %p140 = scmp.eq.s32.totalorder %s14, 1
      %p141 = por %p139, %p140
      %p142 = scmp.ne.s32.totalorder %s134, %s137
      %p143 = scmp.eq.s32.totalorder %s14, 0
      %p144 = por %p142, %p143
      %p145 = scmp.ne.s32.totalorder %s134, %s137
      %p146 = scmp.eq.s32.totalorder %s19, 1
      %p147 = por %p145, %p146
      %p148 = scmp.ne.s32.totalorder %s137, %s138
      %p149 = scmp.eq.s32.totalorder %s19, 0
      %p150 = por %p148, %p149
      %p151 = scmp.ne.s32.totalorder %s137, %s138
      %p152 = scmp.eq.s32.totalorder %s20, 1
      %p153 = por %p151, %p152
      %p155 = scmp.ne.s32.totalorder %s138, %s154
      %p156 = scmp.eq.s32.totalorder %s20, 0
      %p157 = por %p155, %p156
      %p158 = scmp.le.s32.totalorder 1, %s14
      %p159 = scmp.lt.s32.totalorder %s14, 3
      %p160 = pnand %p158, %p159
      %p161 = pneg %p160
      // Predicated region
      $region9: #{router_forward.1} parent=5 // pred_check
        _
      $region10: #{router_forward.1} parent=5 // pred_check_branch
        %163 = sbr.rel (%p160) target = $region12
      $region11: #{router_forward.1} parent=5 // pred_region
        %s164 = ssub.s32 %s14, 1
        // Predicated region
        $region13: #{router_forward.1} parent=11 // pred_check
          %p165 = pneg %p61
        $region14: #{router_forward.1} parent=11 // pred_check_branch
          %167 = sbr.rel (%p165) target = $region16
        $region15: #{router_forward.1} parent=11 // pred_region
          _
        $region16: #{router_forward.1} parent=11 // pred_fallthru
          _
        // Predicated region
        $region17: #{router_forward.1} parent=11 // pred_check
          %p168 = pneg %p82
        $region18: #{router_forward.1} parent=11 // pred_check_branch
          %170 = sbr.rel (%p168) target = $region20
        $region19: #{router_forward.1} parent=11 // pred_region
          _
        $region20: #{router_forward.1} parent=11 // pred_fallthru
          _
        // Predicated region
        $region21: #{router_forward.1} parent=11 // pred_check
          %p171 = pneg %p103
        $region22: #{router_forward.1} parent=11 // pred_check_branch
          %173 = sbr.rel (%p171) target = $region24
        $region23: #{router_forward.1} parent=11 // pred_region
          _
        $region24: #{router_forward.1} parent=11 // pred_fallthru
          _
        // Predicated region
        $region25: #{router_forward.1} parent=11 // pred_check
          %p174 = pneg %p124
        $region26: #{router_forward.1} parent=11 // pred_check_branch
          %176 = sbr.rel (%p174) target = $region28
        $region27: #{router_forward.1} parent=11 // pred_region
          _
        $region28: #{router_forward.1} parent=11 // pred_fallthru
          _
      $region12: #{router_forward.1} parent=5 // pred_fallthru
        _
      %p177 = scmp.lt.s32.totalorder %s14, 2
      // Predicated region
      $region29: #{router_forward.1} parent=5 // pred_check
        %p178 = pneg %p177
      $region30: #{router_forward.1} parent=5 // pred_check_branch
        %180 = sbr.rel (%p178) target = $region32
      $region31: #{router_forward.1} parent=5 // pred_region
        // Predicated region
        $region33: #{router_forward.1} parent=31 // pred_check
          %p181 = pneg %p34
        $region34: #{router_forward.1} parent=31 // pred_check_branch
          %183 = sbr.rel (%p181) target = $region36
        $region35: #{router_forward.1} parent=31 // pred_region
          %p184 = scmp.lt.s32.totalorder %s14, 1
          %s185 = scalar_select %p184, %s14, 1
          %s186 = smul.addr %s185, 8
          %s187 = scalar_lea.vmem %s0, %s186
        $region36: #{router_forward.1} parent=31 // pred_fallthru
          _
      $region32: #{router_forward.1} parent=5 // pred_fallthru
        _
      %p188 = scmp.le.s32.totalorder 1, %s14
      %p189 = scmp.lt.s32.totalorder %s14, 3
      %p190 = pnand %p188, %p189
      %p191 = pneg %p190
      // Predicated region
      $region37: #{router_forward.1} parent=5 // pred_check
        _
      $region38: #{router_forward.1} parent=5 // pred_check_branch
        %193 = sbr.rel (%p190) target = $region40
      $region39: #{router_forward.1} parent=5 // pred_region
        %s194 = ssub.s32 %s14, 1
        %p195 = scmp.lt.s32.totalorder %s19, 1
        %s196 = scalar_select %p195, %s19, 1
        %s197 = smul.addr %s196, 8
        %s198 = scalar_lea.vmem %s0, %s197
        %p199 = pneg %p40
        %p200 = pneg %p37
        %p201 = pneg %p61
        %p202 = pneg %p58
        %p203 = pneg %p82
        %p204 = pneg %p79
        %p205 = pneg %p103
        %p206 = pneg %p100
        %p207 = pneg %p124
        %p208 = pneg %p121
        %p209 = pneg %p150
        %p210 = pneg %p147
        %s211 = sand.u32 %s137, 1
        %s212 = scalar_lea.sflag [#allocation3], %s211
        %s213 = sand.u32 %s137, 1
        %s214 = smul.addr %s213, 8
        %s215 = scalar_lea.vmem [#allocation2], %s214
        %p216 = scmp.lt.s32.totalorder %s19, 1
        %s217 = scalar_select %p216, %s19, 1
        %s218 = smul.addr %s217, 8
        %s219 = scalar_lea.vmem %s0, %s218
        %v220 = vld [vmem:[%s219] sm:$0xff]
        %v221 = vld [vmem:[%s1] sm:$0xff]
        %v222 = vld [vmem:[%s1 + $0x8] sm:$0xff]
        %v223 = vld [vmem:[%s1 + $0x10] sm:$0xff]
        %v224 = vld [vmem:[%s1 + $0x18] sm:$0xff]
        %vm225 = vcmask 261120
        %v227 = vsel %vm225, %v220, 0
        %229 = vmatprep.subr.mxu0 0.0
        %230 = vmatpush1.msra.mxu0 %v221
        %231 = vmatprep.subr.mxu0 0.0
        %232 = vmatpush1.msra.mxu0 %v222
        %233 = vmatprep.subr.mxu0 0.0
        %234 = vmatpush1.msra.mxu0 %v223
        %235 = vmatprep.subr.mxu0 0.0
        %236 = vmatpush1.msra.mxu0 %v224
        %237 = vmatprep.subr.mxu0 0.0
        %238 = vmatpush1.msra.mxu0 0.0
        %239 = vmatprep.subr.mxu0 0.0
        %240 = vmatpush1.msra.mxu0 0.0
        %241 = vmatprep.subr.mxu0 0.0
        %242 = vmatpush1.msra.mxu0 0.0
        %243 = vmatprep.subr.mxu0 0.0
        %244 = vmatpush1.msra.mxu0 0.0
        %245 = vmatprep.subr.mxu0 0.0
        %246 = vmatpush1.msra.mxu0 0.0
        %247 = vmatprep.subr.mxu0 0.0
        %248 = vmatpush1.msra.mxu0 0.0
        %249 = vmatprep.subr.mxu0 0.0
        %250 = vmatpush1.msra.mxu0 0.0
        %251 = vmatprep.subr.mxu0 0.0
        %252 = vmatpush1.msra.mxu0 0.0
        %253 = vmatprep.subr.mxu0 0.0
        %254 = vmatpush1.msra.mxu0 0.0
        %255 = vmatprep.subr.mxu0 0.0
        %256 = vmatpush1.msra.mxu0 0.0
        %257 = vmatprep.subr.mxu0 0.0
        %258 = vmatpush1.msra.mxu0 0.0
        %259 = vmatprep.subr.mxu0 0.0
        %260 = vmatpush1.msra.mxu0 0.0
        %261 = vmatprep.subr.mxu0 0.0
        %262 = vmatpush1.msra.mxu0 0.0
        %263 = vmatprep.subr.mxu0 0.0
        %264 = vmatpush1.msra.mxu0 0.0
        %265 = vmatprep.subr.mxu0 0.0
        %266 = vmatpush1.msra.mxu0 0.0
        %267 = vmatprep.subr.mxu0 0.0
        %268 = vmatpush1.msra.mxu0 0.0
        %269 = vmatprep.subr.mxu0 0.0
        %270 = vmatpush1.msra.mxu0 0.0
        %271 = vmatprep.subr.mxu0 0.0
        %272 = vmatpush1.msra.mxu0 0.0
        %273 = vmatprep.subr.mxu0 0.0
        %274 = vmatpush1.msra.mxu0 0.0
        %275 = vmatprep.subr.mxu0 0.0
        %276 = vmatpush1.msra.mxu0 0.0
        %277 = vmatprep.subr.mxu0 0.0
        %278 = vmatpush1.msra.mxu0 0.0
        %279 = vmatprep.subr.mxu0 0.0
        %280 = vmatpush1.msra.mxu0 0.0
        %281 = vmatprep.subr.mxu0 0.0
        %282 = vmatpush1.msra.mxu0 0.0
        %283 = vmatprep.subr.mxu0 0.0
        %284 = vmatpush1.msra.mxu0 0.0
        %285 = vmatprep.subr.mxu0 0.0
        %286 = vmatpush1.msra.mxu0 0.0
        %287 = vmatprep.subr.mxu0 0.0
        %288 = vmatpush1.msra.mxu0 0.0
        %289 = vmatprep.subr.mxu0 0.0
        %290 = vmatpush1.msra.mxu0 0.0
        %291 = vmatprep.subr.mxu0 0.0
        %292 = vmatpush1.msra.mxu0 0.0
        %293 = vmatprep.mubr.f32.mxu0 0.0
        %294 = vmatmul.mubr.f32.gmra.mrb[0].mxu0 %v227
        %v295 = vpop.f32.mrb[0].mxu0
        %v296 = vadd.f32 0.0, %v295
        %v297 = vpop.f32.mrb[0].mxu0
        %298 = vdwg.mxu0
        %300 = vset.pattern.permute.xlu0 8
        %301 = vperm.xlu0 %300, %v296
        %v302 = vpop.permute.xlu0 %301
        %v304 = vsub.f32 %v220, %v302
        %v305 = vmul.f32 %v304, %v304
        %v306 = vld [vmem:[%s2] sm:$0xff]
        %v307 = vld [vmem:[%s2 + $0x8] sm:$0xff]
        %v308 = vld [vmem:[%s2 + $0x10] sm:$0xff]
        %v309 = vld [vmem:[%s2 + $0x18] sm:$0xff]
        %v311 = vsel %vm225, %v305, 0
        %313 = vmatprep.subr.mxu0 0.0
        %314 = vmatpush1.msra.mxu0 %v306
        %315 = vmatprep.subr.mxu0 0.0
        %316 = vmatpush1.msra.mxu0 %v307
        %317 = vmatprep.subr.mxu0 0.0
        %318 = vmatpush1.msra.mxu0 %v308
        %319 = vmatprep.subr.mxu0 0.0
        %320 = vmatpush1.msra.mxu0 %v309
        %321 = vmatprep.subr.mxu0 0.0
        %322 = vmatpush1.msra.mxu0 0.0
        %323 = vmatprep.subr.mxu0 0.0
        %324 = vmatpush1.msra.mxu0 0.0
        %325 = vmatprep.subr.mxu0 0.0
        %326 = vmatpush1.msra.mxu0 0.0
        %327 = vmatprep.subr.mxu0 0.0
        %328 = vmatpush1.msra.mxu0 0.0
        %329 = vmatprep.subr.mxu0 0.0
        %330 = vmatpush1.msra.mxu0 0.0
        %331 = vmatprep.subr.mxu0 0.0
        %332 = vmatpush1.msra.mxu0 0.0
        %333 = vmatprep.subr.mxu0 0.0
        %334 = vmatpush1.msra.mxu0 0.0
        %335 = vmatprep.subr.mxu0 0.0
        %336 = vmatpush1.msra.mxu0 0.0
        %337 = vmatprep.subr.mxu0 0.0
        %338 = vmatpush1.msra.mxu0 0.0
        %339 = vmatprep.subr.mxu0 0.0
        %340 = vmatpush1.msra.mxu0 0.0
        %341 = vmatprep.subr.mxu0 0.0
        %342 = vmatpush1.msra.mxu0 0.0
        %343 = vmatprep.subr.mxu0 0.0
        %344 = vmatpush1.msra.mxu0 0.0
        %345 = vmatprep.subr.mxu0 0.0
        %346 = vmatpush1.msra.mxu0 0.0
        %347 = vmatprep.subr.mxu0 0.0
        %348 = vmatpush1.msra.mxu0 0.0
        %349 = vmatprep.subr.mxu0 0.0
        %350 = vmatpush1.msra.mxu0 0.0
        %351 = vmatprep.subr.mxu0 0.0
        %352 = vmatpush1.msra.mxu0 0.0
        %353 = vmatprep.subr.mxu0 0.0
        %354 = vmatpush1.msra.mxu0 0.0
        %355 = vmatprep.subr.mxu0 0.0
        %356 = vmatpush1.msra.mxu0 0.0
        %357 = vmatprep.subr.mxu0 0.0
        %358 = vmatpush1.msra.mxu0 0.0
        %359 = vmatprep.subr.mxu0 0.0
        %360 = vmatpush1.msra.mxu0 0.0
        %361 = vmatprep.subr.mxu0 0.0
        %362 = vmatpush1.msra.mxu0 0.0
        %363 = vmatprep.subr.mxu0 0.0
        %364 = vmatpush1.msra.mxu0 0.0
        %365 = vmatprep.subr.mxu0 0.0
        %366 = vmatpush1.msra.mxu0 0.0
        %367 = vmatprep.subr.mxu0 0.0
        %368 = vmatpush1.msra.mxu0 0.0
        %369 = vmatprep.subr.mxu0 0.0
        %370 = vmatpush1.msra.mxu0 0.0
        %371 = vmatprep.subr.mxu0 0.0
        %372 = vmatpush1.msra.mxu0 0.0
        %373 = vmatprep.subr.mxu0 0.0
        %374 = vmatpush1.msra.mxu0 0.0
        %375 = vmatprep.subr.mxu0 0.0
        %376 = vmatpush1.msra.mxu0 0.0
        %377 = vmatprep.mubr.f32.mxu0 0.0
        %378 = vmatmul.mubr.f32.gmra.mrb[0].mxu0 %v311
        %v379 = vpop.f32.mrb[0].mxu0
        %v380 = vadd.f32 1e-05, %v379
        %v381 = vpop.f32.mrb[0].mxu0
        %382 = vdwg.mxu0
        %v383 = vrsqrt.pop %v380
        %v384 = vld [vmem:[%s3] sm:$0x1]
        %v386 = vlaneseq
        %v387 = vshrl.u32 %v386, 7
        %v388 = vsub.s32 0, %v387
        %v389 = vrot.slane %v384, %v388
        %v391 = vmul.f32 %v302, %v389
        %v392 = vsub.f32 %v296, %v391
        %394 = vset.pattern.permute.xlu0 0
        %395 = vperm.xlu0 %394, %v383
        %v396 = vpop.permute.xlu0 %395
        %v398 = vmul.f32 %v396, %v392
        %v399 = vld [vmem:[%s4] sm:$0x1]
        %v401 = vlaneseq
        %v402 = vshrl.u32 %v401, 7
        %v403 = vsub.s32 0, %v402
        %v404 = vrot.slane %v399, %v403
        %v406 = vadd.f32 %v398, %v404
        %vm407 = vcmask 64512
        %v408 = vsel %vm407, %v406, -inf
        %409 = vmax.xlane.f32.xlu0 %v408
        %v410 = vpop.xlane.xlu0 %409
        %v411 = vsub.f32 %v406, %v410
        %v412 = vmul.f32 %v411, 1.442695
        %v413 = vpow.pop %v412
        %v414 = vsel %vm407, %v413, 0.0
        %415 = vadd.xlane.f32.xlu0 %v414
        %v416 = vpop.xlane.xlu0 %415
        %v417 = vrcp.pop %v416
        %v418 = vmul.f32 %v413, %v417
        %419 = vst.msk [vmem:[%s215] sm:$0xff] %vm407, %v418
        %s420 = sand.u32 %s137, 1
        %s421 = scalar_lea.sflag [#allocation3], %s420
        %s422 = sand.u32 %s137, 1
        %s423 = smul.addr %s422, 8
        %s424 = scalar_lea.vmem [#allocation2], %s423
        // Predicated region
        $region41: #{router_forward.1} parent=39 // pred_check
          %p425 = pneg %p147
        $region42: #{router_forward.1} parent=39 // pred_check_branch
          %427 = sbr.rel (%p425) target = $region44
        $region43: #{router_forward.1} parent=39 // pred_region
          %s429 = ssub.s32 128, 128
          %430 = vsyncadd %s421, %s429
          %s431 = smul.addr %s19, 128
          %s432 = scalar_lea.hbm %s5, %s431
          %s434 = sshll.u32 %s424, 4
          %s435 = int_to_ptr.vmem [resolvable:$true] %s434
          %437 = dma.vmem_to_hbm [thread:$0]  %s435, 128, %s432, %s421
        $region44: #{router_forward.1} parent=39 // pred_fallthru
          _
      $region40: #{router_forward.1} parent=5 // pred_fallthru
        _
      %p438 = scmp.le.s32.totalorder 2, %s14
      // Predicated region
      $region45: #{router_forward.1} parent=5 // pred_check
        %p439 = pneg %p438
      $region46: #{router_forward.1} parent=5 // pred_check_branch
        %441 = sbr.rel (%p439) target = $region48
      $region47: #{router_forward.1} parent=5 // pred_region
        %s442 = ssub.s32 %s14, 2
        // Predicated region
        $region49: #{router_forward.1} parent=47 // pred_check
          %p443 = pneg %p153
        $region50: #{router_forward.1} parent=47 // pred_check_branch
          %445 = sbr.rel (%p443) target = $region52
        $region51: #{router_forward.1} parent=47 // pred_region
          %s446 = sand.u32 %s138, 1
          %s447 = scalar_lea.sflag [#allocation3], %s446
          %s448 = sand.u32 %s138, 1
          %s449 = smul.addr %s448, 8
          %s450 = scalar_lea.vmem [#allocation2], %s449
          %451 = dma.done %s447, 128
        $region52: #{router_forward.1} parent=47 // pred_fallthru
          _
      $region48: #{router_forward.1} parent=5 // pred_fallthru
        _
    $region6: #{router_forward.1} parent=1 // loop_footer
      %s18 = sadd.s32 1, %s14
    $region7: #{router_forward.1} parent=1 // loop_footer_branch
      %13 = sbr.rel target = $region3
    $region8: #{router_forward.1} parent=1 // loop_exit
      _
    %452 = vsyncpa [#allocation3], 1
    %s453 = scalar_lea.sflag [#allocation3], 1
    %454 = vsyncpa %s453, 1

</llo_original>
